<compile_context>
chip_gen: v6e
topology: v6e:2x2x1
jax: 0.10.0
libtpu: 0.0.40
codegen_flags: <defaults>
</compile_context>

<pallas_src>
import jax
import jax.numpy as jnp
from jax.experimental import pallas as pl
from jax.experimental.pallas import tpu as pltpu

_LANES = 128                    # vreg lane width (last dim of each block)
_SUBLANES = 8                   # f32 sublane granularity
_TILE_R_MAX = 8192              # (8192, 128) f32 = 4 MiB per buffer
_MIN_GRID_BLOCKS = 4            # keep >=4 blocks so both v7x TCs get work
_PALLAS_MIN_BYTES = 1 << 20     # below ~1 MiB, fused XLA sigmoid beats a pallas_call
_VMEM_LIMIT_BYTES = 32 << 20    # 4 MiB x (in+out) x double-buffer = 16 MiB << 32 MiB


def _make_sigmoid_kernel(compute_dtype):
    def _sigmoid_kernel(x_ref, o_ref):
        # Elementwise hot path: EUP exp + VPU add/recip; cast only if needed.
        x = x_ref[...].astype(compute_dtype)
        o_ref[...] = jax.nn.sigmoid(x).astype(o_ref.dtype)
    return _sigmoid_kernel


def _compute_dtype(dtype):
    """f32 stays f32. Sub-32-bit floats stay native on v6e/v7x (bf16 VPU/EUP);
    v5e and older lack bf16 VPU/EUP, so upcast there."""
    if dtype == jnp.float32:
        return jnp.float32
    kind = jax.devices()[0].device_kind.lower()
    old_chip = any(tag in kind for tag in ("v2", "v3", "v4", "v5"))
    return jnp.float32 if old_chip else dtype


def _pick_tile_rows(rows: int) -> int:
    """Largest sublane-aligned tile <= _TILE_R_MAX that still yields at least
    _MIN_GRID_BLOCKS grid steps when the input is big enough to split."""
    if rows < _MIN_GRID_BLOCKS * _SUBLANES:
        return rows                                   # single full-array block
    tile = min(_TILE_R_MAX, rows // _MIN_GRID_BLOCKS)
    return max(_SUBLANES, (tile // _SUBLANES) * _SUBLANES)


def _sigmoid_bulk(x2d: jax.Array, donate_input: bool) -> jax.Array:
    rows = x2d.shape[0]
    tile_r = _pick_tile_rows(rows)
    grid = (pl.cdiv(rows, tile_r),)
    kernel = _make_sigmoid_kernel(_compute_dtype(x2d.dtype))
    return pl.pallas_call(
        kernel,
        out_shape=jax.ShapeDtypeStruct(x2d.shape, x2d.dtype),
        grid_spec=pl.GridSpec(
            grid=grid,
            in_specs=[pl.BlockSpec((tile_r, _LANES), lambda i: (i, 0))],
            out_specs=pl.BlockSpec((tile_r, _LANES), lambda i: (i, 0)),
        ),
        # In-place sigmoid when the caller can donate the input buffer.
        input_output_aliases={0: 0} if donate_input else {},
        compiler_params=pltpu.CompilerParams(
            dimension_semantics=("parallel",),        # independent blocks -> 2 TCs on v7x
            vmem_limit_bytes=_VMEM_LIMIT_BYTES,
        ),
    )(x2d)


def mynn_forward(x_nchw: jax.Array, *, force_pallas: bool = False,
                 donate_input: bool = False) -> jax.Array:
    """Applies Sigmoid elementwise. Input is NCHW (any shape works)."""
    orig_shape = x_nchw.shape
    total = x_nchw.size
    nbytes = total * x_nchw.dtype.itemsize

    bulk_elems = (total // _LANES) * _LANES

    # Small inputs (or no 128-aligned bulk at all): a standalone pallas_call is
    # pure launch/DMA overhead — let XLA fuse the sigmoid instead.
    if bulk_elems == 0 or (nbytes < _PALLAS_MIN_BYTES and not force_pallas):
        return jax.nn.sigmoid(x_nchw)

    flat = x_nchw.reshape(-1)
    # Lane-dense layout: 128-aligned bulk viewed as (rows, 128) — no padding.
    bulk2d = flat[:bulk_elems].reshape(-1, _LANES)
    bulk_out = _sigmoid_bulk(bulk2d, donate_input).reshape(-1)

    if bulk_elems == total:
        return bulk_out.reshape(orig_shape)

    # <128-element ragged tail: cheaper as a fused XLA op than another pass.
    tail_out = jax.nn.sigmoid(flat[bulk_elems:])
    return jnp.concatenate([bulk_out, tail_out]).reshape(orig_shape)


if __name__ == "__main__":
    k0, k1, k2 = jax.random.split(jax.random.PRNGKey(0), 3)

    # Case 1: exact shape pattern from the reference script: reshape(-1, 1, 2, 2).
    # Only 8 elements -> handled entirely by the fused-XLA small-input path.
    x_tiny = jax.random.normal(k0, (8,), dtype=jnp.float32).reshape(-1, 1, 2, 2)
    out_tiny = jax.block_until_ready(mynn_forward(x_tiny))
    assert out_tiny.shape == x_tiny.shape
    assert jnp.allclose(out_tiny, jax.nn.sigmoid(x_tiny), atol=1e-6), \
        "mismatch vs reference sigmoid (tiny, gated path)"

    # Case 2: same NCHW pattern with batch 512 -> 2048 elems, tail-free; force
    # the Pallas path so the kernel is exercised (single full-array block).
    x_small = jax.random.normal(k1, (512, 1, 2, 2), dtype=jnp.float32)
    out_small = jax.block_until_ready(mynn_forward(x_small, force_pallas=True))
    assert out_small.shape == x_small.shape
    assert jnp.allclose(out_small, jax.nn.sigmoid(x_small), atol=1e-6), \
        "mismatch vs reference sigmoid (single-block pallas path)"

    # Case 3: moderate NCHW tensor exercising the multi-block grid (4 blocks),
    # a 64-element ragged tail, and the in-place alias path.
    # 4*4*66*66 = 69696 elems -> bulk rows 544 (tile 136, grid 4) + tail 64.
    x_big = jax.random.normal(k2, (4, 4, 66, 66), dtype=jnp.float32)
    out_big = jax.block_until_ready(
        mynn_forward(x_big, force_pallas=True, donate_input=True))
    assert out_big.shape == x_big.shape
    assert jnp.allclose(out_big, jax.nn.sigmoid(x_big), atol=1e-6), \
        "mismatch vs reference sigmoid (tiled + tail + alias path)"

    print("KERNEL_OK")
</pallas_src>

<mosaic_0001>
module attributes {stable_mosaic.version = 11 : i64} {
  func.func @_sigmoid_kernel(%arg0: i32, %arg1: memref<16x128xf32, #tpu.memory_space<vmem>>, %arg2: memref<16x128xf32, #tpu.memory_space<vmem>>) attributes {dimension_semantics = [#tpu.dimension_semantics<parallel>], iteration_bounds = array<i64: 1>, scalar_prefetch = 0 : i64, scratch_operands = 0 : i64, tpu.core_type = #tpu.core_type<tc>, window_params = [{transform_indices = @transform_0, window_bounds = array<i64: 16, 128>}, {transform_indices = @transform_1, window_bounds = array<i64: 16, 128>}]} {
    %c0 = arith.constant 0 : index
    %c0_0 = arith.constant 0 : index
    %0 = vector.load %arg1[%c0, %c0_0] : memref<16x128xf32, #tpu.memory_space<vmem>>, vector<16x128xf32>
    %1 = arith.negf %0 : vector<16x128xf32>
    %2 = math.exp %1 : vector<16x128xf32>
    %cst = arith.constant 1.000000e+00 : f32
    %3 = vector.broadcast %cst : f32 to vector<16x128xf32>
    %4 = arith.addf %3, %2 : vector<16x128xf32>
    %5 = arith.divf %3, %4 : vector<16x128xf32>
    %c0_1 = arith.constant 0 : index
    %c0_2 = arith.constant 0 : index
    %6 = vector.load %arg2[%c0_1, %c0_2] : memref<16x128xf32, #tpu.memory_space<vmem>>, vector<16x128xf32>
    tpu.vector_store %arg2[%c0_1, %c0_2], %5 {strides = array<i32>} : memref<16x128xf32, #tpu.memory_space<vmem>>, vector<16x128xf32>,
    return
  }
  func.func @transform_0(%arg0: i32) -> (i32, i32) {
    %c0_i32 = arith.constant 0 : i32
    %c0_i32_0 = arith.constant 0 : i32
    return %arg0, %c0_i32 : i32, i32
  }
  func.func @transform_1(%arg0: i32) -> (i32, i32) {
    %c0_i32 = arith.constant 0 : i32
    %c0_i32_0 = arith.constant 0 : i32
    return %arg0, %c0_i32 : i32, i32
  }
}

</mosaic_0001>

<llo_original>
// kernel: tpu_custom_call.1
$region0: #{tpu_custom_call.1}
  #allocation0 [shape = 'u32[]', space=smem, size = 0x4, offset = 0x4, fixed_abs, tag = 'smem constant byte address 0x4 - core index']
  #allocation1 [shape = 'u32[144,128]{1,0:T(1,128)}', space=vmem, size = 0x12000, scoped, tag = 'internal scratch']
  %s0 = inlined_call_operand.hbm [shape: f32[16,128], index: 0, kind: input, shape index: {}]
  %s1 = inlined_call_operand.hbm [shape: f32[16,128], index: 1, kind: output, shape index: {}]
  %s2 = sld [smem:[#allocation0]]
  $region18: #{tpu_custom_call.1} parent=0
    _
  %s4 = ssub.s32 1, %s2
  %s5 = scalar_select 0, %s4, %s2
  $region1: #{tpu_custom_call.1} parent=0
    #allocation2 [shape = 'u8[8192]{0}', space=vmem, size = 0x2000, scoped, tag = 'input window, operand 0, single buffered']
    #allocation3 [shape = 's32[1]{0}', space=sflag, size = 0x4, scoped, tag = 'scoped memory for tpu_custom_call.1']
    #allocation4 [shape = 's32[1]{0}', space=sflag, size = 0x4, scoped, tag = 'scoped memory for tpu_custom_call.1']
    #allocation5 [shape = 'u8[8192]{0}', space=vmem, size = 0x2000, scoped, tag = 'output window, operand 0, single buffered']
    %6 = vsyncpa [#allocation3], 0
    %7 = vsyncpa [#allocation4], 0
    // Predicated region
    $region2: #{tpu_custom_call.1} parent=1 // pred_check
      _
    $region3: #{tpu_custom_call.1} parent=1 // pred_check_branch
      %9 = sbr.rel (0) target = $region5
    $region4: #{tpu_custom_call.1} parent=1 // pred_region
      %s11 = ssub.s32 256, 256
      %12 = vsyncadd [#allocation3], %s11
      %s13 = sshll.u32 [#allocation2], 4
      %s14 = int_to_ptr.vmem [resolvable:$true] %s13
      %19 = dma.hbm_to_vmem [thread:$0]  %s0, 256, %s14, [#allocation3], 128, 128, 8
    $region5: #{tpu_custom_call.1} parent=1 // pred_fallthru
      _
    // Predicated region
    $region6: #{tpu_custom_call.1} parent=1 // pred_check
      _
    $region7: #{tpu_custom_call.1} parent=1 // pred_check_branch
      %21 = sbr.rel (0) target = $region9
    $region8: #{tpu_custom_call.1} parent=1 // pred_region
      %22 = dma.done [#allocation3], 256
    $region9: #{tpu_custom_call.1} parent=1 // pred_fallthru
      _
    %v23 = vld [vmem:[#allocation2] sm:$0xff]
    %v24 = vld [vmem:[#allocation2 + $0x8] sm:$0xff]
    %v25 = vxor.u32 %v23, 2147483648
    %v26 = vxor.u32 %v24, 2147483648
    %v27 = vmul.f32 %v25, 1.442695
    %v28 = vpow.pop %v27
    %v29 = vmul.f32 %v26, 1.442695
    %v30 = vpow.pop %v29
    %v31 = vadd.f32 %v28, 1.0
    %v32 = vadd.f32 %v30, 1.0
    %v33 = vrcp.pop %v31
    %v34 = vmul.f32 1.0, %v33
    %v35 = vrcp.pop %v32
    %v36 = vmul.f32 1.0, %v35
    %37 = vst [vmem:[#allocation5] sm:$0xff] %v34
    %38 = vst [vmem:[#allocation5 + $0x8] sm:$0xff] %v36
    // Predicated region
    $region10: #{tpu_custom_call.1} parent=1 // pred_check
      _
    $region11: #{tpu_custom_call.1} parent=1 // pred_check_branch
      %40 = sbr.rel (0) target = $region13
    $region12: #{tpu_custom_call.1} parent=1 // pred_region
      %s42 = ssub.s32 256, 256
      %43 = vsyncadd [#allocation4], %s42
      %s44 = sshll.u32 [#allocation5], 4
      %s45 = int_to_ptr.vmem [resolvable:$true] %s44
      %50 = dma.vmem_to_hbm [thread:$0]  %s45, 256, %s1, [#allocation4], 128, 128, 8
    $region13: #{tpu_custom_call.1} parent=1 // pred_fallthru
      _
    // Predicated region
    $region14: #{tpu_custom_call.1} parent=1 // pred_check
      _
    $region15: #{tpu_custom_call.1} parent=1 // pred_check_branch
      %52 = sbr.rel (0) target = $region17
    $region16: #{tpu_custom_call.1} parent=1 // pred_region
      %53 = dma.done [#allocation4], 256
    $region17: #{tpu_custom_call.1} parent=1 // pred_fallthru
      _
    %54 = vsyncpa [#allocation3], 1
    %55 = vsyncpa [#allocation4], 1

</llo_original>
